<compile_context>
chip_gen: v5e
topology: v5e:2x2
jax: 0.10.0
libtpu: 0.0.40
codegen_flags: <defaults>
</compile_context>

<pallas_src>
import itertools

import numpy as np

import jax
import jax.numpy as jnp
from jax.experimental import pallas as pl
from jax.experimental.pallas import tpu as pltpu


def _make_pit_kernel(Bb, S, T, P):
    """Kernel: (Bb, S*T) x/y blocks + (S*S, P) one-hot -> (Bb, P) possible losses."""
    inv = 1.0 / float(S * T)

    def kernel(x_ref, y_ref, oh_ref, out_ref):
        # x_ref, y_ref: (Bb, S*T) VMEM tiles in the ORIGINAL input dtype; the
        # f32 cast happens per-slice after the (cheap) VMEM load, so bf16
        # inputs only pay bf16 HBM bandwidth.
        # oh_ref: (S*S, P) f32 with oh[s*S + sp, p] = 1 iff patterns[p, s] == sp.
        acc = jnp.zeros((Bb, P), jnp.float32)
        for s in range(S):                       # unrolled: S is tiny (2..5)
            xs = x_ref[:, s * T:(s + 1) * T].astype(jnp.float32)          # (Bb, T)
            for sp in range(S):
                ysp = y_ref[:, sp * T:(sp + 1) * T].astype(jnp.float32)   # (Bb, T)
                d = xs - ysp
                # Numerically robust direct reduction (no cancellation-prone
                # ||x||^2 + ||y||^2 - 2xy formulation).
                pair = jnp.sum(d * d, axis=-1, keepdims=True)             # (Bb, 1)
                idx = s * S + sp
                oh_row = oh_ref[idx:idx + 1, :]                           # (1, P)
                acc = acc + pair * oh_row                                 # (Bb, P)
        out_ref[...] = acc * inv

    return kernel


def _choose_block_batch(batch, row_bytes):
    """Pick Bb (batch elements per grid step).

    Constraints:
      * Bb divides batch (clean grid).
      * Bb is a multiple of 8 OR equals batch (BlockSpec sublane rule).
      * 2 inputs x 2 pipeline buffers x Bb x row_bytes stays ~<= 24 MiB so a
        step (plus f32 temporaries) fits v7x's 64 MiB VMEM under the 48 MiB
        scoped limit requested below (v5e/v6e have more headroom).
      * Prefer >= 2 grid steps so v7x's two TensorCores can both work.
    """
    max_bb = max(1, (24 << 20) // (4 * row_bytes))
    divisors = [d for d in range(1, batch + 1) if batch % d == 0]
    cands = [d for d in divisors if d % 8 == 0 or d == batch]
    fits = [d for d in cands if d <= max_bb]
    if not fits:
        # TODO(synk): for very long T (S*T per element approaching the VMEM
        # budget) add a T-reduction grid axis ("arbitrary", last) with an f32
        # VMEM scratch accumulator instead of one oversized block.
        return min(cands)
    multi = [d for d in fits if batch // d >= 2]
    return max(multi) if multi else max(fits)


def pit_possible_losses(x, y, onehot, n_sources):
    """x, y: (B, S*T) arrays (any float dtype, kept as-is through the DMA).
    onehot: (S*S, P) f32 permutation one-hot.
    Returns possible_loss (B, P) f32: MSE of x vs each source permutation of y."""
    B, ST = x.shape
    S = n_sources
    T = ST // S
    assert S * T == ST, "trailing dims must be divisible by n_sources"
    P = onehot.shape[1]

    Bb = _choose_block_batch(B, ST * x.dtype.itemsize)
    kernel = _make_pit_kernel(Bb, S, T, P)

    cost = pl.CostEstimate(
        flops=3 * B * S * S * T + 2 * B * S * S * P,
        transcendentals=0,
        bytes_accessed=(B * ST * (x.dtype.itemsize + y.dtype.itemsize)
                        + B * P * 4 + (B // Bb) * S * S * P * 4),
    )

    return pl.pallas_call(
        kernel,
        out_shape=jax.ShapeDtypeStruct((B, P), jnp.float32),
        grid_spec=pltpu.PrefetchScalarGridSpec(
            num_scalar_prefetch=0,
            grid=(B // Bb,),
            in_specs=[
                pl.BlockSpec((Bb, ST), lambda i: (i, 0)),
                pl.BlockSpec((Bb, ST), lambda i: (i, 0)),
                pl.BlockSpec((S * S, P), lambda i: (0, 0)),
            ],
            out_specs=pl.BlockSpec((Bb, P), lambda i: (i, 0)),
        ),
        compiler_params=pltpu.CompilerParams(
            dimension_semantics=("parallel",),
            vmem_limit_bytes=48 << 20,
        ),
        cost_estimate=cost,
    )(x, y, onehot)


class PIT:
    """JAX/Pallas equivalent of the PyTorch PIT module (criterion = MSE)."""

    def __init__(self, n_sources):
        self.n_sources = n_sources
        perms = list(itertools.permutations(range(n_sources)))
        self.patterns = jnp.asarray(perms, dtype=jnp.int32)            # (P, S)
        P, S = len(perms), n_sources
        oh = np.zeros((S * S, P), dtype=np.float32)
        for p, perm in enumerate(perms):
            for s, sp in enumerate(perm):
                oh[s * S + sp, p] = 1.0
        self.onehot = jnp.asarray(oh)                                   # (S*S, P)

    def __call__(self, input, target, batch_mean=True):
        B, S = input.shape[0], input.shape[1]
        # Flatten trailing dims; keep the ORIGINAL dtype — no f32 upcast in HBM.
        x = jnp.reshape(input, (B, -1))
        y = jnp.reshape(target, (B, -1))

        possible = pit_possible_losses(x, y, self.onehot, S)            # (B, P)

        loss = jnp.min(possible, axis=1)                                # (B,)
        idx = jnp.argmin(possible, axis=1)                              # (B,)
        pattern = self.patterns[idx]                                    # (B, S)
        if batch_mean:
            loss = jnp.mean(loss, axis=0)
        return loss, pattern


def _reference(input, target, patterns, batch_mean=True):
    """Pure-JAX reference mirroring the PyTorch code (criterion = MSE)."""
    B, S = input.shape[0], input.shape[1]
    x = jnp.reshape(input, (B, S, -1)).astype(jnp.float32)
    y = jnp.reshape(target, (B, S, -1)).astype(jnp.float32)
    losses = []
    for p in range(patterns.shape[0]):
        perm = patterns[p]
        losses.append(jnp.mean((x - y[:, perm]) ** 2, axis=(1, 2)))
    possible = jnp.stack(losses, axis=1)                                # (B, P)
    loss = jnp.min(possible, axis=1)
    idx = jnp.argmin(possible, axis=1)
    if batch_mean:
        loss = jnp.mean(loss, axis=0)
    return loss, patterns[idx]


if __name__ == "__main__":
    # Small shapes consistent with the module: (batch, n_sources, time)
    B, S, T = 2, 4, 128
    key = jax.random.PRNGKey(0)
    k1, k2 = jax.random.split(key)
    inp = jax.random.normal(k1, (B, S, T), dtype=jnp.float32)
    tgt = jax.random.normal(k2, (B, S, T), dtype=jnp.float32)

    pit_module = PIT(n_sources=S)

    # f32 path
    loss, pattern = pit_module(inp, tgt, batch_mean=True)
    loss = jax.block_until_ready(loss)
    pattern = jax.block_until_ready(pattern)
    ref_loss, ref_pattern = _reference(inp, tgt, pit_module.patterns, batch_mean=True)
    assert jnp.allclose(loss, ref_loss, rtol=1e-4, atol=1e-4), (loss, ref_loss)
    assert jnp.array_equal(pattern, ref_pattern), (pattern, ref_pattern)

    # bf16-through-DMA path: inputs stay bf16 in HBM; kernel casts after load.
    inp16, tgt16 = inp.astype(jnp.bfloat16), tgt.astype(jnp.bfloat16)
    loss16, pattern16 = pit_module(inp16, tgt16, batch_mean=True)
    loss16 = jax.block_until_ready(loss16)
    ref_loss16, ref_pattern16 = _reference(inp16, tgt16, pit_module.patterns,
                                           batch_mean=True)
    assert jnp.allclose(loss16, ref_loss16, rtol=1e-3, atol=1e-3), (loss16, ref_loss16)
    assert jnp.array_equal(pattern16, ref_pattern16), (pattern16, ref_pattern16)

    print("KERNEL_OK")
</pallas_src>

<mosaic_0001>
module attributes {stable_mosaic.version = 11 : i64} {
  func.func @kernel(%arg0: i32, %arg1: memref<2x512xf32, #tpu.memory_space<vmem>>, %arg2: memref<2x512xf32, #tpu.memory_space<vmem>>, %arg3: memref<16x24xf32, #tpu.memory_space<vmem>>, %arg4: memref<2x24xf32, #tpu.memory_space<vmem>>) attributes {dimension_semantics = [#tpu.dimension_semantics<parallel>], iteration_bounds = array<i64: 1>, scalar_prefetch = 0 : i64, scratch_operands = 0 : i64, tpu.core_type = #tpu.core_type<tc>, window_params = [{transform_indices = @transform_0, window_bounds = array<i64: 2, 512>}, {transform_indices = @transform_1, window_bounds = array<i64: 2, 512>}, {pipeline_mode = #tpu.pipeline_mode<synchronous>, transform_indices = @transform_2, window_bounds = array<i64: 16, 24>}, {transform_indices = @transform_3, window_bounds = array<i64: 2, 24>}]} {
    %cst = arith.constant 0.000000e+00 : f32
    %0 = vector.broadcast %cst : f32 to vector<2x24xf32>
    %c0 = arith.constant 0 : index
    %c0_0 = arith.constant 0 : index
    %1 = vector.load %arg1[%c0, %c0_0] : memref<2x512xf32, #tpu.memory_space<vmem>>, vector<2x128xf32>
    %c0_1 = arith.constant 0 : index
    %c0_2 = arith.constant 0 : index
    %2 = vector.load %arg2[%c0_1, %c0_2] : memref<2x512xf32, #tpu.memory_space<vmem>>, vector<2x128xf32>
    %3 = arith.subf %1, %2 : vector<2x128xf32>
    %4 = arith.mulf %3, %3 : vector<2x128xf32>
    %cst_3 = arith.constant dense<0.000000e+00> : vector<2xf32>
    %5 = vector.multi_reduction <add>, %4, %cst_3 [1] : vector<2x128xf32> to vector<2xf32>
    %6 = vector.shape_cast %5 : vector<2xf32> to vector<2x1xf32>
    %c0_4 = arith.constant 0 : index
    %c0_5 = arith.constant 0 : index
    %7 = vector.load %arg3[%c0_4, %c0_5] : memref<16x24xf32, #tpu.memory_space<vmem>>, vector<1x24xf32>
    %8 = vector.broadcast %6 : vector<2x1xf32> to vector<2x24xf32>
    %9 = vector.broadcast %7 : vector<1x24xf32> to vector<2x24xf32>
    %10 = arith.mulf %8, %9 : vector<2x24xf32>
    %11 = arith.addf %0, %10 : vector<2x24xf32>
    %c0_6 = arith.constant 0 : index
    %c128 = arith.constant 128 : index
    %12 = vector.load %arg2[%c0_6, %c128] : memref<2x512xf32, #tpu.memory_space<vmem>>, vector<2x128xf32>
    %13 = arith.subf %1, %12 : vector<2x128xf32>
    %14 = arith.mulf %13, %13 : vector<2x128xf32>
    %cst_7 = arith.constant dense<0.000000e+00> : vector<2xf32>
    %15 = vector.multi_reduction <add>, %14, %cst_7 [1] : vector<2x128xf32> to vector<2xf32>
    %16 = vector.shape_cast %15 : vector<2xf32> to vector<2x1xf32>
    %c1 = arith.constant 1 : index
    %c0_8 = arith.constant 0 : index
    %17 = vector.load %arg3[%c1, %c0_8] : memref<16x24xf32, #tpu.memory_space<vmem>>, vector<1x24xf32>
    %18 = vector.broadcast %16 : vector<2x1xf32> to vector<2x24xf32>
    %19 = vector.broadcast %17 : vector<1x24xf32> to vector<2x24xf32>
    %20 = arith.mulf %18, %19 : vector<2x24xf32>
    %21 = arith.addf %11, %20 : vector<2x24xf32>
    %c0_9 = arith.constant 0 : index
    %c256 = arith.constant 256 : index
    %22 = vector.load %arg2[%c0_9, %c256] : memref<2x512xf32, #tpu.memory_space<vmem>>, vector<2x128xf32>
    %23 = arith.subf %1, %22 : vector<2x128xf32>
    %24 = arith.mulf %23, %23 : vector<2x128xf32>
    %cst_10 = arith.constant dense<0.000000e+00> : vector<2xf32>
    %25 = vector.multi_reduction <add>, %24, %cst_10 [1] : vector<2x128xf32> to vector<2xf32>
    %26 = vector.shape_cast %25 : vector<2xf32> to vector<2x1xf32>
    %c2 = arith.constant 2 : index
    %c0_11 = arith.constant 0 : index
    %27 = vector.load %arg3[%c2, %c0_11] : memref<16x24xf32, #tpu.memory_space<vmem>>, vector<1x24xf32>
    %28 = vector.broadcast %26 : vector<2x1xf32> to vector<2x24xf32>
    %29 = vector.broadcast %27 : vector<1x24xf32> to vector<2x24xf32>
    %30 = arith.mulf %28, %29 : vector<2x24xf32>
    %31 = arith.addf %21, %30 : vector<2x24xf32>
    %c0_12 = arith.constant 0 : index
    %c384 = arith.constant 384 : index
    %32 = vector.load %arg2[%c0_12, %c384] : memref<2x512xf32, #tpu.memory_space<vmem>>, vector<2x128xf32>
    %33 = arith.subf %1, %32 : vector<2x128xf32>
    %34 = arith.mulf %33, %33 : vector<2x128xf32>
    %cst_13 = arith.constant dense<0.000000e+00> : vector<2xf32>
    %35 = vector.multi_reduction <add>, %34, %cst_13 [1] : vector<2x128xf32> to vector<2xf32>
    %36 = vector.shape_cast %35 : vector<2xf32> to vector<2x1xf32>
    %c3 = arith.constant 3 : index
    %c0_14 = arith.constant 0 : index
    %37 = vector.load %arg3[%c3, %c0_14] : memref<16x24xf32, #tpu.memory_space<vmem>>, vector<1x24xf32>
    %38 = vector.broadcast %36 : vector<2x1xf32> to vector<2x24xf32>
    %39 = vector.broadcast %37 : vector<1x24xf32> to vector<2x24xf32>
    %40 = arith.mulf %38, %39 : vector<2x24xf32>
    %41 = arith.addf %31, %40 : vector<2x24xf32>
    %c0_15 = arith.constant 0 : index
    %c128_16 = arith.constant 128 : index
    %42 = vector.load %arg1[%c0_15, %c128_16] : memref<2x512xf32, #tpu.memory_space<vmem>>, vector<2x128xf32>
    %c0_17 = arith.constant 0 : index
    %c0_18 = arith.constant 0 : index
    %43 = vector.load %arg2[%c0_17, %c0_18] : memref<2x512xf32, #tpu.memory_space<vmem>>, vector<2x128xf32>
    %44 = arith.subf %42, %43 : vector<2x128xf32>
    %45 = arith.mulf %44, %44 : vector<2x128xf32>
    %cst_19 = arith.constant dense<0.000000e+00> : vector<2xf32>
    %46 = vector.multi_reduction <add>, %45, %cst_19 [1] : vector<2x128xf32> to vector<2xf32>
    %47 = vector.shape_cast %46 : vector<2xf32> to vector<2x1xf32>
    %c4 = arith.constant 4 : index
    %c0_20 = arith.constant 0 : index
    %48 = vector.load %arg3[%c4, %c0_20] : memref<16x24xf32, #tpu.memory_space<vmem>>, vector<1x24xf32>
    %49 = vector.broadcast %47 : vector<2x1xf32> to vector<2x24xf32>
    %50 = vector.broadcast %48 : vector<1x24xf32> to vector<2x24xf32>
    %51 = arith.mulf %49, %50 : vector<2x24xf32>
    %52 = arith.addf %41, %51 : vector<2x24xf32>
    %c0_21 = arith.constant 0 : index
    %c128_22 = arith.constant 128 : index
    %53 = vector.load %arg2[%c0_21, %c128_22] : memref<2x512xf32, #tpu.memory_space<vmem>>, vector<2x128xf32>
    %54 = arith.subf %42, %53 : vector<2x128xf32>
    %55 = arith.mulf %54, %54 : vector<2x128xf32>
    %cst_23 = arith.constant dense<0.000000e+00> : vector<2xf32>
    %56 = vector.multi_reduction <add>, %55, %cst_23 [1] : vector<2x128xf32> to vector<2xf32>
    %57 = vector.shape_cast %56 : vector<2xf32> to vector<2x1xf32>
    %c5 = arith.constant 5 : index
    %c0_24 = arith.constant 0 : index
    %58 = vector.load %arg3[%c5, %c0_24] : memref<16x24xf32, #tpu.memory_space<vmem>>, vector<1x24xf32>
    %59 = vector.broadcast %57 : vector<2x1xf32> to vector<2x24xf32>
    %60 = vector.broadcast %58 : vector<1x24xf32> to vector<2x24xf32>
    %61 = arith.mulf %59, %60 : vector<2x24xf32>
    %62 = arith.addf %52, %61 : vector<2x24xf32>
    %c0_25 = arith.constant 0 : index
    %c256_26 = arith.constant 256 : index
    %63 = vector.load %arg2[%c0_25, %c256_26] : memref<2x512xf32, #tpu.memory_space<vmem>>, vector<2x128xf32>
    %64 = arith.subf %42, %63 : vector<2x128xf32>
    %65 = arith.mulf %64, %64 : vector<2x128xf32>
    %cst_27 = arith.constant dense<0.000000e+00> : vector<2xf32>
    %66 = vector.multi_reduction <add>, %65, %cst_27 [1] : vector<2x128xf32> to vector<2xf32>
    %67 = vector.shape_cast %66 : vector<2xf32> to vector<2x1xf32>
    %c6 = arith.constant 6 : index
    %c0_28 = arith.constant 0 : index
    %68 = vector.load %arg3[%c6, %c0_28] : memref<16x24xf32, #tpu.memory_space<vmem>>, vector<1x24xf32>
    %69 = vector.broadcast %67 : vector<2x1xf32> to vector<2x24xf32>
    %70 = vector.broadcast %68 : vector<1x24xf32> to vector<2x24xf32>
    %71 = arith.mulf %69, %70 : vector<2x24xf32>
    %72 = arith.addf %62, %71 : vector<2x24xf32>
    %c0_29 = arith.constant 0 : index
    %c384_30 = arith.constant 384 : index
    %73 = vector.load %arg2[%c0_29, %c384_30] : memref<2x512xf32, #tpu.memory_space<vmem>>, vector<2x128xf32>
    %74 = arith.subf %42, %73 : vector<2x128xf32>
    %75 = arith.mulf %74, %74 : vector<2x128xf32>
    %cst_31 = arith.constant dense<0.000000e+00> : vector<2xf32>
    %76 = vector.multi_reduction <add>, %75, %cst_31 [1] : vector<2x128xf32> to vector<2xf32>
    %77 = vector.shape_cast %76 : vector<2xf32> to vector<2x1xf32>
    %c7 = arith.constant 7 : index
    %c0_32 = arith.constant 0 : index
    %78 = vector.load %arg3[%c7, %c0_32] : memref<16x24xf32, #tpu.memory_space<vmem>>, vector<1x24xf32>
    %79 = vector.broadcast %77 : vector<2x1xf32> to vector<2x24xf32>
    %80 = vector.broadcast %78 : vector<1x24xf32> to vector<2x24xf32>
    %81 = arith.mulf %79, %80 : vector<2x24xf32>
    %82 = arith.addf %72, %81 : vector<2x24xf32>
    %c0_33 = arith.constant 0 : index
    %c256_34 = arith.constant 256 : index
    %83 = vector.load %arg1[%c0_33, %c256_34] : memref<2x512xf32, #tpu.memory_space<vmem>>, vector<2x128xf32>
    %c0_35 = arith.constant 0 : index
    %c0_36 = arith.constant 0 : index
    %84 = vector.load %arg2[%c0_35, %c0_36] : memref<2x512xf32, #tpu.memory_space<vmem>>, vector<2x128xf32>
    %85 = arith.subf %83, %84 : vector<2x128xf32>
    %86 = arith.mulf %85, %85 : vector<2x128xf32>
    %cst_37 = arith.constant dense<0.000000e+00> : vector<2xf32>
    %87 = vector.multi_reduction <add>, %86, %cst_37 [1] : vector<2x128xf32> to vector<2xf32>
    %88 = vector.shape_cast %87 : vector<2xf32> to vector<2x1xf32>
    %c8 = arith.constant 8 : index
    %c0_38 = arith.constant 0 : index
    %89 = vector.load %arg3[%c8, %c0_38] : memref<16x24xf32, #tpu.memory_space<vmem>>, vector<1x24xf32>
    %90 = vector.broadcast %88 : vector<2x1xf32> to vector<2x24xf32>
    %91 = vector.broadcast %89 : vector<1x24xf32> to vector<2x24xf32>
    %92 = arith.mulf %90, %91 : vector<2x24xf32>
    %93 = arith.addf %82, %92 : vector<2x24xf32>
    %c0_39 = arith.constant 0 : index
    %c128_40 = arith.constant 128 : index
    %94 = vector.load %arg2[%c0_39, %c128_40] : memref<2x512xf32, #tpu.memory_space<vmem>>, vector<2x128xf32>
    %95 = arith.subf %83, %94 : vector<2x128xf32>
    %96 = arith.mulf %95, %95 : vector<2x128xf32>
    %cst_41 = arith.constant dense<0.000000e+00> : vector<2xf32>
    %97 = vector.multi_reduction <add>, %96, %cst_41 [1] : vector<2x128xf32> to vector<2xf32>
    %98 = vector.shape_cast %97 : vector<2xf32> to vector<2x1xf32>
    %c9 = arith.constant 9 : index
    %c0_42 = arith.constant 0 : index
    %99 = vector.load %arg3[%c9, %c0_42] : memref<16x24xf32, #tpu.memory_space<vmem>>, vector<1x24xf32>
    %100 = vector.broadcast %98 : vector<2x1xf32> to vector<2x24xf32>
    %101 = vector.broadcast %99 : vector<1x24xf32> to vector<2x24xf32>
    %102 = arith.mulf %100, %101 : vector<2x24xf32>
    %103 = arith.addf %93, %102 : vector<2x24xf32>
    %c0_43 = arith.constant 0 : index
    %c256_44 = arith.constant 256 : index
    %104 = vector.load %arg2[%c0_43, %c256_44] : memref<2x512xf32, #tpu.memory_space<vmem>>, vector<2x128xf32>
    %105 = arith.subf %83, %104 : vector<2x128xf32>
    %106 = arith.mulf %105, %105 : vector<2x128xf32>
    %cst_45 = arith.constant dense<0.000000e+00> : vector<2xf32>
    %107 = vector.multi_reduction <add>, %106, %cst_45 [1] : vector<2x128xf32> to vector<2xf32>
    %108 = vector.shape_cast %107 : vector<2xf32> to vector<2x1xf32>
    %c10 = arith.constant 10 : index
    %c0_46 = arith.constant 0 : index
    %109 = vector.load %arg3[%c10, %c0_46] : memref<16x24xf32, #tpu.memory_space<vmem>>, vector<1x24xf32>
    %110 = vector.broadcast %108 : vector<2x1xf32> to vector<2x24xf32>
    %111 = vector.broadcast %109 : vector<1x24xf32> to vector<2x24xf32>
    %112 = arith.mulf %110, %111 : vector<2x24xf32>
    %113 = arith.addf %103, %112 : vector<2x24xf32>
    %c0_47 = arith.constant 0 : index
    %c384_48 = arith.constant 384 : index
    %114 = vector.load %arg2[%c0_47, %c384_48] : memref<2x512xf32, #tpu.memory_space<vmem>>, vector<2x128xf32>
    %115 = arith.subf %83, %114 : vector<2x128xf32>
    %116 = arith.mulf %115, %115 : vector<2x128xf32>
    %cst_49 = arith.constant dense<0.000000e+00> : vector<2xf32>
    %117 = vector.multi_reduction <add>, %116, %cst_49 [1] : vector<2x128xf32> to vector<2xf32>
    %118 = vector.shape_cast %117 : vector<2xf32> to vector<2x1xf32>
    %c11 = arith.constant 11 : index
    %c0_50 = arith.constant 0 : index
    %119 = vector.load %arg3[%c11, %c0_50] : memref<16x24xf32, #tpu.memory_space<vmem>>, vector<1x24xf32>
    %120 = vector.broadcast %118 : vector<2x1xf32> to vector<2x24xf32>
    %121 = vector.broadcast %119 : vector<1x24xf32> to vector<2x24xf32>
    %122 = arith.mulf %120, %121 : vector<2x24xf32>
    %123 = arith.addf %113, %122 : vector<2x24xf32>
    %c0_51 = arith.constant 0 : index
    %c384_52 = arith.constant 384 : index
    %124 = vector.load %arg1[%c0_51, %c384_52] : memref<2x512xf32, #tpu.memory_space<vmem>>, vector<2x128xf32>
    %c0_53 = arith.constant 0 : index
    %c0_54 = arith.constant 0 : index
    %125 = vector.load %arg2[%c0_53, %c0_54] : memref<2x512xf32, #tpu.memory_space<vmem>>, vector<2x128xf32>
    %126 = arith.subf %124, %125 : vector<2x128xf32>
    %127 = arith.mulf %126, %126 : vector<2x128xf32>
    %cst_55 = arith.constant dense<0.000000e+00> : vector<2xf32>
    %128 = vector.multi_reduction <add>, %127, %cst_55 [1] : vector<2x128xf32> to vector<2xf32>
    %129 = vector.shape_cast %128 : vector<2xf32> to vector<2x1xf32>
    %c12 = arith.constant 12 : index
    %c0_56 = arith.constant 0 : index
    %130 = vector.load %arg3[%c12, %c0_56] : memref<16x24xf32, #tpu.memory_space<vmem>>, vector<1x24xf32>
    %131 = vector.broadcast %129 : vector<2x1xf32> to vector<2x24xf32>
    %132 = vector.broadcast %130 : vector<1x24xf32> to vector<2x24xf32>
    %133 = arith.mulf %131, %132 : vector<2x24xf32>
    %134 = arith.addf %123, %133 : vector<2x24xf32>
    %c0_57 = arith.constant 0 : index
    %c128_58 = arith.constant 128 : index
    %135 = vector.load %arg2[%c0_57, %c128_58] : memref<2x512xf32, #tpu.memory_space<vmem>>, vector<2x128xf32>
    %136 = arith.subf %124, %135 : vector<2x128xf32>
    %137 = arith.mulf %136, %136 : vector<2x128xf32>
    %cst_59 = arith.constant dense<0.000000e+00> : vector<2xf32>
    %138 = vector.multi_reduction <add>, %137, %cst_59 [1] : vector<2x128xf32> to vector<2xf32>
    %139 = vector.shape_cast %138 : vector<2xf32> to vector<2x1xf32>
    %c13 = arith.constant 13 : index
    %c0_60 = arith.constant 0 : index
    %140 = vector.load %arg3[%c13, %c0_60] : memref<16x24xf32, #tpu.memory_space<vmem>>, vector<1x24xf32>
    %141 = vector.broadcast %139 : vector<2x1xf32> to vector<2x24xf32>
    %142 = vector.broadcast %140 : vector<1x24xf32> to vector<2x24xf32>
    %143 = arith.mulf %141, %142 : vector<2x24xf32>
    %144 = arith.addf %134, %143 : vector<2x24xf32>
    %c0_61 = arith.constant 0 : index
    %c256_62 = arith.constant 256 : index
    %145 = vector.load %arg2[%c0_61, %c256_62] : memref<2x512xf32, #tpu.memory_space<vmem>>, vector<2x128xf32>
    %146 = arith.subf %124, %145 : vector<2x128xf32>
    %147 = arith.mulf %146, %146 : vector<2x128xf32>
    %cst_63 = arith.constant dense<0.000000e+00> : vector<2xf32>
    %148 = vector.multi_reduction <add>, %147, %cst_63 [1] : vector<2x128xf32> to vector<2xf32>
    %149 = vector.shape_cast %148 : vector<2xf32> to vector<2x1xf32>
    %c14 = arith.constant 14 : index
    %c0_64 = arith.constant 0 : index
    %150 = vector.load %arg3[%c14, %c0_64] : memref<16x24xf32, #tpu.memory_space<vmem>>, vector<1x24xf32>
    %151 = vector.broadcast %149 : vector<2x1xf32> to vector<2x24xf32>
    %152 = vector.broadcast %150 : vector<1x24xf32> to vector<2x24xf32>
    %153 = arith.mulf %151, %152 : vector<2x24xf32>
    %154 = arith.addf %144, %153 : vector<2x24xf32>
    %c0_65 = arith.constant 0 : index
    %c384_66 = arith.constant 384 : index
    %155 = vector.load %arg2[%c0_65, %c384_66] : memref<2x512xf32, #tpu.memory_space<vmem>>, vector<2x128xf32>
    %156 = arith.subf %124, %155 : vector<2x128xf32>
    %157 = arith.mulf %156, %156 : vector<2x128xf32>
    %cst_67 = arith.constant dense<0.000000e+00> : vector<2xf32>
    %158 = vector.multi_reduction <add>, %157, %cst_67 [1] : vector<2x128xf32> to vector<2xf32>
    %159 = vector.shape_cast %158 : vector<2xf32> to vector<2x1xf32>
    %c15 = arith.constant 15 : index
    %c0_68 = arith.constant 0 : index
    %160 = vector.load %arg3[%c15, %c0_68] : memref<16x24xf32, #tpu.memory_space<vmem>>, vector<1x24xf32>
    %161 = vector.broadcast %159 : vector<2x1xf32> to vector<2x24xf32>
    %162 = vector.broadcast %160 : vector<1x24xf32> to vector<2x24xf32>
    %163 = arith.mulf %161, %162 : vector<2x24xf32>
    %164 = arith.addf %154, %163 : vector<2x24xf32>
    %cst_69 = arith.constant 0.001953125 : f32
    %165 = vector.broadcast %cst_69 : f32 to vector<2x24xf32>
    %166 = arith.mulf %164, %165 : vector<2x24xf32>
    %c0_70 = arith.constant 0 : index
    %c0_71 = arith.constant 0 : index
    %167 = vector.load %arg4[%c0_70, %c0_71] : memref<2x24xf32, #tpu.memory_space<vmem>>, vector<2x24xf32>
    tpu.vector_store %arg4[%c0_70, %c0_71], %166 {strides = array<i32>} : memref<2x24xf32, #tpu.memory_space<vmem>>, vector<2x24xf32>,
    return
  }
  func.func @transform_0(%arg0: i32) -> (i32, i32) {
    %c0_i32 = arith.constant 0 : i32
    %c0_i32_0 = arith.constant 0 : i32
    return %arg0, %c0_i32 : i32, i32
  }
  func.func @transform_1(%arg0: i32) -> (i32, i32) {
    %c0_i32 = arith.constant 0 : i32
    %c0_i32_0 = arith.constant 0 : i32
    return %arg0, %c0_i32 : i32, i32
  }
  func.func @transform_2(%arg0: i32) -> (i32, i32) {
    %c0_i32 = arith.constant 0 : i32
    %c0_i32_0 = arith.constant 0 : i32
    %c0_i32_1 = arith.constant 0 : i32
    return %c0_i32, %c0_i32_0 : i32, i32
  }
  func.func @transform_3(%arg0: i32) -> (i32, i32) {
    %c0_i32 = arith.constant 0 : i32
    %c0_i32_0 = arith.constant 0 : i32
    return %arg0, %c0_i32 : i32, i32
  }
}

</mosaic_0001>

<llo_original>
// kernel: tpu_custom_call.1
$region0: #{tpu_custom_call.1}
  #allocation0 [shape = 'u32[]', space=smem, size = 0x4, offset = 0x4, fixed_abs, tag = 'smem constant byte address 0x4 - core index']
  #allocation1 [shape = 'u32[72,128]{1,0:T(1,128)}', space=vmem, size = 0x9000, scoped, tag = 'internal scratch']
  %s0 = inlined_call_operand.hbm [shape: f32[2,512], index: 0, kind: input, shape index: {}]
  %s1 = inlined_call_operand.hbm [shape: f32[2,512], index: 1, kind: input, shape index: {}]
  %s2 = inlined_call_operand.hbm [shape: f32[16,24], index: 2, kind: input, shape index: {}]
  %s3 = inlined_call_operand.hbm [shape: f32[2,24], index: 3, kind: output, shape index: {}]
  %s4 = sld [smem:[#allocation0]]
  $region34: #{tpu_custom_call.1} parent=0
    _
  %s6 = ssub.s32 1, %s4
  %s7 = scalar_select 0, %s6, %s4
  $region1: #{tpu_custom_call.1} parent=0
    #allocation2 [shape = 'u8[4096]{0}', space=vmem, size = 0x1000, scoped, tag = 'input window, operand 0, single buffered']
    #allocation3 [shape = 's32[1]{0}', space=sflag, size = 0x4, scoped, tag = 'scoped memory for tpu_custom_call.1']
    #allocation4 [shape = 's32[1]{0}', space=sflag, size = 0x4, scoped, tag = 'scoped memory for tpu_custom_call.1']
    #allocation5 [shape = 'u8[4096]{0}', space=vmem, size = 0x1000, scoped, tag = 'input window, operand 1, single buffered']
    #allocation6 [shape = 's32[1]{0}', space=sflag, size = 0x4, scoped, tag = 'scoped memory for tpu_custom_call.1']
    #allocation7 [shape = 'u8[8192]{0}', space=vmem, size = 0x2000, scoped, tag = 'input window, operand 2, single buffered']
    #allocation8 [shape = 'u8[1024]{0}', space=vmem, size = 0x400, scoped, tag = 'output window, operand 0, single buffered']
    %8 = vsyncpa [#allocation3], 0
    %9 = vsyncpa [#allocation6], 0
    %10 = vsyncpa [#allocation4], 0
    // Predicated region
    $region2: #{tpu_custom_call.1} parent=1 // pred_check
      _
    $region3: #{tpu_custom_call.1} parent=1 // pred_check_branch
      %12 = sbr.rel (0) target = $region5
    $region4: #{tpu_custom_call.1} parent=1 // pred_region
      %14 = vsyncadd [#allocation3], 0
      %s16 = sshll.u32 %s0, 4
      %s17 = int_to_ptr.hbm [resolvable:$true] %s16
      %s18 = sshll.u32 [#allocation2], 4
      %s19 = int_to_ptr.vmem [resolvable:$true] %s18
      %21 = dma.hbm_to_vmem [thread:$0]  %s17, 128, %s19, [#allocation3]
    $region5: #{tpu_custom_call.1} parent=1 // pred_fallthru
      _
    // Predicated region
    $region6: #{tpu_custom_call.1} parent=1 // pred_check
      _
    $region7: #{tpu_custom_call.1} parent=1 // pred_check_branch
      %23 = sbr.rel (0) target = $region9
    $region8: #{tpu_custom_call.1} parent=1 // pred_region
      %25 = vsyncadd [#allocation6], 0
      %s27 = sshll.u32 %s1, 4
      %s28 = int_to_ptr.hbm [resolvable:$true] %s27
      %s29 = sshll.u32 [#allocation5], 4
      %s30 = int_to_ptr.vmem [resolvable:$true] %s29
      %32 = dma.hbm_to_vmem [thread:$0]  %s28, 128, %s30, [#allocation6]
    $region9: #{tpu_custom_call.1} parent=1 // pred_fallthru
      _
    // Predicated region
    $region10: #{tpu_custom_call.1} parent=1 // pred_check
      _
    $region11: #{tpu_custom_call.1} parent=1 // pred_check_branch
      %34 = sbr.rel (0) target = $region13
    $region12: #{tpu_custom_call.1} parent=1 // pred_region
      %36 = vsyncadd [#allocation6], 0
      %s37 = sshll.u32 %s2, 4
      %s38 = int_to_ptr.hbm [resolvable:$true] %s37
      %s39 = sshll.u32 [#allocation7], 4
      %s40 = int_to_ptr.vmem [resolvable:$true] %s39
      %45 = dma.hbm_to_vmem [thread:$0]  %s38, 256, %s40, [#allocation6], 128, 128, 8
    $region13: #{tpu_custom_call.1} parent=1 // pred_fallthru
      _
    // Predicated region
    $region14: #{tpu_custom_call.1} parent=1 // pred_check
      _
    $region15: #{tpu_custom_call.1} parent=1 // pred_check_branch
      %47 = sbr.rel (0) target = $region17
    $region16: #{tpu_custom_call.1} parent=1 // pred_region
      %49 = dma.done [#allocation3], 128
    $region17: #{tpu_custom_call.1} parent=1 // pred_fallthru
      _
    // Predicated region
    $region18: #{tpu_custom_call.1} parent=1 // pred_check
      _
    $region19: #{tpu_custom_call.1} parent=1 // pred_check_branch
      %51 = sbr.rel (0) target = $region21
    $region20: #{tpu_custom_call.1} parent=1 // pred_region
      %53 = dma.done [#allocation6], 128
    $region21: #{tpu_custom_call.1} parent=1 // pred_fallthru
      _
    // Predicated region
    $region22: #{tpu_custom_call.1} parent=1 // pred_check
      _
    $region23: #{tpu_custom_call.1} parent=1 // pred_check_branch
      %55 = sbr.rel (0) target = $region25
    $region24: #{tpu_custom_call.1} parent=1 // pred_region
      %57 = dma.done [#allocation6], 256
    $region25: #{tpu_custom_call.1} parent=1 // pred_fallthru
      _
    %v58 = vld [vmem:[#allocation2] sm:$0x3]
    %v59 = vld [vmem:[#allocation5] sm:$0x3]
    %v60 = vsub.f32 %v58, %v59
    %v61 = vmul.f32 %v60, %v60
    %vm62 = vcmask 1041408
    %v63 = vsel %vm62, %v61, 0.0
    %64 = vadd.xlane.f32.xlu0 %v63
    %v65 = vpop.xlane.xlu0 %64
    %v66 = vld [vmem:[#allocation7] sm:$0x1]
    %v67 = vperm.slane %v66, 0
    %v68 = vmul.f32 %v65, %v67
    %v69 = vadd.f32 %v68, 0.0
    %v70 = vld [vmem:[#allocation5 + $0x2] sm:$0x3]
    %v71 = vsub.f32 %v58, %v70
    %v72 = vmul.f32 %v71, %v71
    %v73 = vsel %vm62, %v72, 0.0
    %74 = vadd.xlane.f32.xlu0 %v73
    %v75 = vpop.xlane.xlu0 %74
    %v76 = vld [vmem:[#allocation7 + $0x1] sm:$0x1]
    %v77 = vperm.slane %v76, 0
    %v78 = vmul.f32 %v75, %v77
    %v79 = vadd.f32 %v69, %v78
    %v80 = vld [vmem:[#allocation5 + $0x4] sm:$0x3]
    %v81 = vsub.f32 %v58, %v80
    %v82 = vmul.f32 %v81, %v81
    %v83 = vsel %vm62, %v82, 0.0
    %84 = vadd.xlane.f32.xlu0 %v83
    %v85 = vpop.xlane.xlu0 %84
    %v86 = vld [vmem:[#allocation7 + $0x2] sm:$0x1]
    %v87 = vperm.slane %v86, 0
    %v88 = vmul.f32 %v85, %v87
    %v89 = vadd.f32 %v79, %v88
    %v90 = vld [vmem:[#allocation5 + $0x6] sm:$0x3]
    %v91 = vsub.f32 %v58, %v90
    %v92 = vmul.f32 %v91, %v91
    %v93 = vsel %vm62, %v92, 0.0
    %94 = vadd.xlane.f32.xlu0 %v93
    %v95 = vpop.xlane.xlu0 %94
    %v96 = vld [vmem:[#allocation7 + $0x3] sm:$0x1]
    %v97 = vperm.slane %v96, 0
    %v98 = vmul.f32 %v95, %v97
    %v99 = vadd.f32 %v89, %v98
    %v100 = vld [vmem:[#allocation2 + $0x2] sm:$0x3]
    %v101 = vsub.f32 %v100, %v59
    %v102 = vmul.f32 %v101, %v101
    %v103 = vsel %vm62, %v102, 0.0
    %104 = vadd.xlane.f32.xlu0 %v103
    %v105 = vpop.xlane.xlu0 %104
    %v106 = vld [vmem:[#allocation7 + $0x4] sm:$0x1]
    %v107 = vperm.slane %v106, 0
    %v108 = vmul.f32 %v105, %v107
    %v109 = vadd.f32 %v99, %v108
    %v110 = vsub.f32 %v100, %v70
    %v111 = vmul.f32 %v110, %v110
    %v112 = vsel %vm62, %v111, 0.0
    %113 = vadd.xlane.f32.xlu0 %v112
    %v114 = vpop.xlane.xlu0 %113
    %v115 = vld [vmem:[#allocation7 + $0x5] sm:$0x1]
    %v116 = vperm.slane %v115, 0
    %v117 = vmul.f32 %v114, %v116
    %v118 = vadd.f32 %v109, %v117
    %v119 = vsub.f32 %v100, %v80
    %v120 = vmul.f32 %v119, %v119
    %v121 = vsel %vm62, %v120, 0.0
    %122 = vadd.xlane.f32.xlu0 %v121
    %v123 = vpop.xlane.xlu0 %122
    %v124 = vld [vmem:[#allocation7 + $0x6] sm:$0x1]
    %v125 = vperm.slane %v124, 0
    %v126 = vmul.f32 %v123, %v125
    %v127 = vadd.f32 %v118, %v126
    %v128 = vsub.f32 %v100, %v90
    %v129 = vmul.f32 %v128, %v128
    %v130 = vsel %vm62, %v129, 0.0
    %131 = vadd.xlane.f32.xlu0 %v130
    %v132 = vpop.xlane.xlu0 %131
    %v133 = vld [vmem:[#allocation7 + $0x7] sm:$0x1]
    %v134 = vperm.slane %v133, 0
    %v135 = vmul.f32 %v132, %v134
    %v136 = vadd.f32 %v127, %v135
    %v137 = vld [vmem:[#allocation2 + $0x4] sm:$0x3]
    %v138 = vsub.f32 %v137, %v59
    %v139 = vmul.f32 %v138, %v138
    %v140 = vsel %vm62, %v139, 0.0
    %141 = vadd.xlane.f32.xlu0 %v140
    %v142 = vpop.xlane.xlu0 %141
    %v143 = vld [vmem:[#allocation7 + $0x8] sm:$0x1]
    %v144 = vperm.slane %v143, 0
    %v145 = vmul.f32 %v142, %v144
    %v146 = vadd.f32 %v136, %v145
    %v147 = vsub.f32 %v137, %v70
    %v148 = vmul.f32 %v147, %v147
    %v149 = vsel %vm62, %v148, 0.0
    %150 = vadd.xlane.f32.xlu0 %v149
    %v151 = vpop.xlane.xlu0 %150
    %v152 = vld [vmem:[#allocation7 + $0x9] sm:$0x1]
    %v153 = vperm.slane %v152, 0
    %v154 = vmul.f32 %v151, %v153
    %v155 = vadd.f32 %v146, %v154
    %v156 = vsub.f32 %v137, %v80
    %v157 = vmul.f32 %v156, %v156
    %v158 = vsel %vm62, %v157, 0.0
    %159 = vadd.xlane.f32.xlu0 %v158
    %v160 = vpop.xlane.xlu0 %159
    %v161 = vld [vmem:[#allocation7 + $0xa] sm:$0x1]
    %v162 = vperm.slane %v161, 0
    %v163 = vmul.f32 %v160, %v162
    %v164 = vadd.f32 %v155, %v163
    %v165 = vsub.f32 %v137, %v90
    %v166 = vmul.f32 %v165, %v165
    %v167 = vsel %vm62, %v166, 0.0
    %168 = vadd.xlane.f32.xlu0 %v167
    %v169 = vpop.xlane.xlu0 %168
    %v170 = vld [vmem:[#allocation7 + $0xb] sm:$0x1]
    %v171 = vperm.slane %v170, 0
    %v172 = vmul.f32 %v169, %v171
    %v173 = vadd.f32 %v164, %v172
    %v174 = vld [vmem:[#allocation2 + $0x6] sm:$0x3]
    %v175 = vsub.f32 %v174, %v59
    %v176 = vmul.f32 %v175, %v175
    %v177 = vsel %vm62, %v176, 0.0
    %178 = vadd.xlane.f32.xlu0 %v177
    %v179 = vpop.xlane.xlu0 %178
    %v180 = vld [vmem:[#allocation7 + $0xc] sm:$0x1]
    %v181 = vperm.slane %v180, 0
    %v182 = vmul.f32 %v179, %v181
    %v183 = vadd.f32 %v173, %v182
    %v184 = vsub.f32 %v174, %v70
    %v185 = vmul.f32 %v184, %v184
    %v186 = vsel %vm62, %v185, 0.0
    %187 = vadd.xlane.f32.xlu0 %v186
    %v188 = vpop.xlane.xlu0 %187
    %v189 = vld [vmem:[#allocation7 + $0xd] sm:$0x1]
    %v190 = vperm.slane %v189, 0
    %v191 = vmul.f32 %v188, %v190
    %v192 = vadd.f32 %v183, %v191
    %v193 = vsub.f32 %v174, %v80
    %v194 = vmul.f32 %v193, %v193
    %v195 = vsel %vm62, %v194, 0.0
    %196 = vadd.xlane.f32.xlu0 %v195
    %v197 = vpop.xlane.xlu0 %196
    %v198 = vld [vmem:[#allocation7 + $0xe] sm:$0x1]
    %v199 = vperm.slane %v198, 0
    %v200 = vmul.f32 %v197, %v199
    %v201 = vadd.f32 %v192, %v200
    %v202 = vsub.f32 %v174, %v90
    %v203 = vmul.f32 %v202, %v202
    %v204 = vsel %vm62, %v203, 0.0
    %205 = vadd.xlane.f32.xlu0 %v204
    %v206 = vpop.xlane.xlu0 %205
    %v207 = vld [vmem:[#allocation7 + $0xf] sm:$0x1]
    %v208 = vperm.slane %v207, 0
    %v209 = vmul.f32 %v206, %v208
    %v210 = vadd.f32 %v201, %v209
    %v211 = vmul.f32 %v210, 0.001953125
    %vm212 = vcmask 189440
    %213 = vst.msk [vmem:[#allocation8] sm:$0x3] %vm212, %v211
    // Predicated region
    $region26: #{tpu_custom_call.1} parent=1 // pred_check
      _
    $region27: #{tpu_custom_call.1} parent=1 // pred_check_branch
      %215 = sbr.rel (0) target = $region29
    $region28: #{tpu_custom_call.1} parent=1 // pred_region
      %217 = vsyncadd [#allocation4], 0
      %s219 = sshll.u32 [#allocation8], 4
      %s220 = int_to_ptr.vmem [resolvable:$true] %s219
      %s221 = sshll.u32 %s3, 4
      %s222 = int_to_ptr.hbm [resolvable:$true] %s221
      %224 = dma.vmem_to_hbm [thread:$0]  %s220, 32, %s222, [#allocation4]
    $region29: #{tpu_custom_call.1} parent=1 // pred_fallthru
      _
    // Predicated region
    $region30: #{tpu_custom_call.1} parent=1 // pred_check
      _
    $region31: #{tpu_custom_call.1} parent=1 // pred_check_branch
      %226 = sbr.rel (0) target = $region33
    $region32: #{tpu_custom_call.1} parent=1 // pred_region
      %228 = dma.done [#allocation4], 32
    $region33: #{tpu_custom_call.1} parent=1 // pred_fallthru
      _
    %229 = vsyncpa [#allocation3], 1
    %230 = vsyncpa [#allocation6], 1
    %231 = vsyncpa [#allocation4], 1

</llo_original>
